<compile_context>
chip_gen: v7x
topology: tpu7x:2x2x1
jax: 0.10.0
libtpu: 0.0.40
codegen_flags: <defaults>
</compile_context>

<pallas_src>
import math
import functools

import jax
import jax.numpy as jnp
from jax.experimental import pallas as pl
from jax.experimental.pallas import tpu as pltpu


def _round_up(x, m):
    return ((x + m - 1) // m) * m


def _cdiv(a, b):
    return -(-a // b)


# ----------------------------------------------------------------------------
# Pallas kernel
# ----------------------------------------------------------------------------
def _qnet_kernel(D, K0, n_hidden, act_size, dueling, bias_off,
                 x_ref, p_ref, out_ref):
    """x_ref: (TB, K0) input tile (K0 = round_up(obs_size, 8)).
    p_ref: packed params; rows [i*D : (i+1)*D] = weight of layer i (zero padded),
           row bias_off + i = bias of layer i (zero padded).
    out_ref: (TB, D) lane-dense padded output."""
    h = x_ref[...]
    n_total = n_hidden + 1  # hidden layers + fused head
    for i in range(n_total):
        if i > 0:
            h = jnp.tanh(h)
        k = K0 if i == 0 else D                       # layer-0 contraction uses only K0 rows
        w = p_ref[pl.ds(i * D, k), :]                 # (k, D) static, zero-cost view
        b = p_ref[pl.ds(bias_off + i, 1), :]          # (1, D) static view
        h = jnp.dot(h, w, preferred_element_type=jnp.float32) + b

    if not dueling:
        # cols [0:act_size] hold Q, rest zero (zero-padded weights/bias).
        out_ref[...] = h.astype(out_ref.dtype)
    else:
        # Head layout: cols [0:act_size] = A, col act_size = V, rest exactly zero.
        lane = jax.lax.broadcasted_iota(jnp.int32, h.shape, 1)
        total = jnp.sum(h, axis=-1, keepdims=True)                              # sum(A) + V
        v = jnp.sum(jnp.where(lane == act_size, h, 0.0), axis=-1, keepdims=True)  # V
        adv_mean = (total - v) * (1.0 / float(act_size))
        # cols < act_size: A + V - mean(A).  Padded cols hold junk; sliced off outside.
        out_ref[...] = (h + (v - adv_mean)).astype(out_ref.dtype)


# ----------------------------------------------------------------------------
# Host-side param init / packing
# ----------------------------------------------------------------------------
def init_qnetwork_params(key, obs_size, act_size, layers, dueling):
    """Mimic nn.Linear defaults (uniform +-1/sqrt(fan_in)).
    Returns list of (w (in,out), b (out,)) for hidden layers then head(s)
    (dueling: [..., (wV,bV), (wA,bA)])."""
    dims = []
    fan_in = obs_size
    for l in layers:
        dims.append((fan_in, l))
        fan_in = l
    heads = [1, act_size] if dueling else [act_size]
    for h in heads:
        dims.append((fan_in, h))

    params = []
    for fi, fo in dims:
        key, kw, kb = jax.random.split(key, 3)
        bound = 1.0 / math.sqrt(fi)
        w = jax.random.uniform(kw, (fi, fo), jnp.float32, -bound, bound)
        b = jax.random.uniform(kb, (fo,), jnp.float32, -bound, bound)
        params.append((w, b))
    return params


def pack_qnetwork_params(params, obs_size, act_size, layers, dueling):
    """Pack everything into one zero-padded (total_rows, D) f32 buffer.
    Layer i weight lives in rows [i*D, (i+1)*D); biases live one-per-row starting
    at bias_off. Dueling V/A heads are fused: A in cols [0:act), V in col act."""
    n_hidden = len(layers)
    head_out = act_size + 1 if dueling else act_size
    D = _round_up(max([obs_size] + list(layers) + [head_out]), 128)
    n_total = n_hidden + 1
    bias_off = n_total * D
    total_rows = bias_off + _round_up(n_total, 8)

    buf = jnp.zeros((total_rows, D), jnp.float32)
    for i in range(n_hidden):
        w, b = params[i]
        buf = buf.at[i * D:i * D + w.shape[0], :w.shape[1]].set(w)
        buf = buf.at[bias_off + i, :w.shape[1]].set(b)

    off = n_hidden * D
    if dueling:
        wV, bV = params[n_hidden]
        wA, bA = params[n_hidden + 1]
        buf = buf.at[off:off + wA.shape[0], :act_size].set(wA)
        buf = buf.at[off:off + wV.shape[0], act_size].set(wV[:, 0])
        buf = buf.at[bias_off + n_hidden, :act_size].set(bA)
        buf = buf.at[bias_off + n_hidden, act_size].set(bV[0])
    else:
        wQ, bQ = params[n_hidden]
        buf = buf.at[off:off + wQ.shape[0], :act_size].set(wQ)
        buf = buf.at[bias_off + n_hidden, :act_size].set(bQ)

    meta = dict(D=D, n_hidden=n_hidden, obs_size=obs_size, act_size=act_size,
                dueling=dueling, bias_off=bias_off)
    return buf, meta


# ----------------------------------------------------------------------------
# Jitted wrapper factory
# ----------------------------------------------------------------------------
def make_qnetwork_forward(meta, batch_tile=1024, min_split_batch=256):
    """Returns a jitted fwd(x, packed) -> (B, act_size) callable."""
    D = meta["D"]
    act_size = meta["act_size"]
    obs_size = meta["obs_size"]
    K0 = _round_up(obs_size, 8)
    batch_tile = max(8, _round_up(int(batch_tile), 8))   # defensive: valid sublane multiple

    kernel = functools.partial(
        _qnet_kernel, D, K0, meta["n_hidden"], act_size,
        meta["dueling"], meta["bias_off"])

    @jax.jit
    def fwd(x, packed):
        B = x.shape[0]
        # Tile choice: big tiles to amortize ~0.35us/step overhead, but
        #  - force >=2 grid steps for large B so v7x's 2 TensorCores both work,
        #  - size TB so the last tile carries at most a few padded rows.
        n_tiles = max(_cdiv(B, batch_tile), 2 if B >= min_split_batch else 1)
        TB = _round_up(_cdiv(B, n_tiles), 8)
        B_pad = TB * n_tiles

        if B_pad == B and x.shape[1] == K0:
            x_in = x
        else:
            x_in = jnp.zeros((B_pad, K0), jnp.float32).at[:B, :x.shape[1]].set(x)

        # Only raise the scoped VMEM limit when we actually need it (v5e default 16 MiB).
        est_bytes = (2 * TB * K0 + 2 * TB * D + 2 * packed.size + 6 * TB * D) * 4
        vmem_limit = None if est_bytes < (16 << 20) else min(2 * est_bytes, 100 << 20)

        out = pl.pallas_call(
            kernel,
            out_shape=jax.ShapeDtypeStruct((B_pad, D), jnp.float32),
            grid_spec=pltpu.PrefetchScalarGridSpec(
                num_scalar_prefetch=0,
                grid=(n_tiles,),
                in_specs=[
                    pl.BlockSpec((TB, K0), lambda i: (i, 0)),        # x tile (narrow lanes)
                    pl.BlockSpec(packed.shape, lambda i: (0, 0)),    # params: VMEM-resident
                ],
                out_specs=pl.BlockSpec((TB, D), lambda i: (i, 0)),   # lane-dense output
            ),
            compiler_params=pltpu.CompilerParams(
                dimension_semantics=("parallel",),
                vmem_limit_bytes=vmem_limit),
        )(x_in, packed)
        return out[:B, :act_size]

    return fwd


# ----------------------------------------------------------------------------
# Pure-JAX reference (unpacked params, PyTorch semantics)
# ----------------------------------------------------------------------------
def qnetwork_forward_ref(x, params, n_hidden, dueling):
    h = x
    for i in range(n_hidden):
        w, b = params[i]
        if i > 0:
            h = jnp.tanh(h)
        h = h @ w + b
    h = jnp.tanh(h)
    if not dueling:
        w, b = params[n_hidden]
        return h @ w + b
    wV, bV = params[n_hidden]
    wA, bA = params[n_hidden + 1]
    v = h @ wV + bV
    a = h @ wA + bA
    return v + (a - jnp.mean(a, axis=-1, keepdims=True))


if __name__ == "__main__":
    key = jax.random.PRNGKey(0)

    obs_size = 16
    act_size = 4
    hidden_layers = [32, 32]

    key, kx1, kx2, kp1, kp2 = jax.random.split(key, 5)
    x_small = jax.random.normal(kx1, (8, obs_size), jnp.float32)
    x_big = jax.random.normal(kx2, (300, obs_size), jnp.float32)   # exercises 2-tile ragged path

    # --- dueling variant ---
    params_duel = init_qnetwork_params(kp1, obs_size, act_size, hidden_layers, dueling=True)
    packed_d, meta_d = pack_qnetwork_params(params_duel, obs_size, act_size,
                                            hidden_layers, dueling=True)
    fwd_d = make_qnetwork_forward(meta_d)

    q_duel = jax.block_until_ready(fwd_d(x_small, packed_d))
    q_duel_ref = qnetwork_forward_ref(x_small, params_duel, len(hidden_layers), dueling=True)
    assert q_duel.shape == (8, act_size)
    assert jnp.allclose(q_duel, q_duel_ref, atol=1e-5, rtol=1e-5), "dueling (small) mismatch"

    q_duel_big = jax.block_until_ready(fwd_d(x_big, packed_d))
    q_duel_big_ref = qnetwork_forward_ref(x_big, params_duel, len(hidden_layers), dueling=True)
    assert q_duel_big.shape == (300, act_size)
    assert jnp.allclose(q_duel_big, q_duel_big_ref, atol=1e-5, rtol=1e-5), "dueling (big) mismatch"

    # --- plain variant ---
    params_plain = init_qnetwork_params(kp2, obs_size, act_size, hidden_layers, dueling=False)
    packed_p, meta_p = pack_qnetwork_params(params_plain, obs_size, act_size,
                                            hidden_layers, dueling=False)
    fwd_p = make_qnetwork_forward(meta_p)

    q_plain = jax.block_until_ready(fwd_p(x_small, packed_p))
    q_plain_ref = qnetwork_forward_ref(x_small, params_plain, len(hidden_layers), dueling=False)
    assert jnp.allclose(q_plain, q_plain_ref, atol=1e-5, rtol=1e-5), "plain mismatch"

    print("KERNEL_OK")
</pallas_src>

<mosaic_0001>
module attributes {stable_mosaic.version = 11 : i64} {
  func.func @_qnet_kernel(%arg0: i32, %arg1: memref<8x16xf32, #tpu.memory_space<vmem>>, %arg2: memref<392x128xf32, #tpu.memory_space<vmem>>, %arg3: memref<8x128xf32, #tpu.memory_space<vmem>>) attributes {dimension_semantics = [#tpu.dimension_semantics<parallel>], iteration_bounds = array<i64: 1>, scalar_prefetch = 0 : i64, scratch_operands = 0 : i64, tpu.core_type = #tpu.core_type<tc>, window_params = [{transform_indices = @transform_0, window_bounds = array<i64: 8, 16>}, {pipeline_mode = #tpu.pipeline_mode<synchronous>, transform_indices = @transform_1, window_bounds = array<i64: 392, 128>}, {transform_indices = @transform_2, window_bounds = array<i64: 8, 128>}]} {
    %c0 = arith.constant 0 : index
    %c0_0 = arith.constant 0 : index
    %0 = vector.load %arg1[%c0, %c0_0] : memref<8x16xf32, #tpu.memory_space<vmem>>, vector<8x16xf32>
    %c0_1 = arith.constant 0 : index
    %c0_2 = arith.constant 0 : index
    %1 = vector.load %arg2[%c0_1, %c0_2] : memref<392x128xf32, #tpu.memory_space<vmem>>, vector<16x128xf32>
    %c384 = arith.constant 384 : index
    %c0_3 = arith.constant 0 : index
    %2 = vector.load %arg2[%c384, %c0_3] : memref<392x128xf32, #tpu.memory_space<vmem>>, vector<1x128xf32>
    %cst = arith.constant dense<0.000000e+00> : vector<8x128xf32>
    %3 = tpu.matmul %0, %1, %cst {dimension_numbers = #tpu.dot_dimension_numbers<[1], [0], [0], [1], [0, 0, 1, 1], [], []>} : vector<8x16xf32>, vector<16x128xf32>, vector<8x128xf32> -> vector<8x128xf32>
    %4 = vector.broadcast %2 : vector<1x128xf32> to vector<8x128xf32>
    %5 = arith.addf %3, %4 : vector<8x128xf32>
    %6 = math.tanh %5 : vector<8x128xf32>
    %c128 = arith.constant 128 : index
    %c0_4 = arith.constant 0 : index
    %7 = vector.load %arg2[%c128, %c0_4] : memref<392x128xf32, #tpu.memory_space<vmem>>, vector<128x128xf32>
    %c385 = arith.constant 385 : index
    %c0_5 = arith.constant 0 : index
    %8 = vector.load %arg2[%c385, %c0_5] : memref<392x128xf32, #tpu.memory_space<vmem>>, vector<1x128xf32>
    %cst_6 = arith.constant dense<0.000000e+00> : vector<8x128xf32>
    %9 = tpu.matmul %6, %7, %cst_6 {dimension_numbers = #tpu.dot_dimension_numbers<[1], [0], [0], [1], [0, 0, 1, 1], [], []>} : vector<8x128xf32>, vector<128x128xf32>, vector<8x128xf32> -> vector<8x128xf32>
    %10 = vector.broadcast %8 : vector<1x128xf32> to vector<8x128xf32>
    %11 = arith.addf %9, %10 : vector<8x128xf32>
    %12 = math.tanh %11 : vector<8x128xf32>
    %c256 = arith.constant 256 : index
    %c0_7 = arith.constant 0 : index
    %13 = vector.load %arg2[%c256, %c0_7] : memref<392x128xf32, #tpu.memory_space<vmem>>, vector<128x128xf32>
    %c386 = arith.constant 386 : index
    %c0_8 = arith.constant 0 : index
    %14 = vector.load %arg2[%c386, %c0_8] : memref<392x128xf32, #tpu.memory_space<vmem>>, vector<1x128xf32>
    %cst_9 = arith.constant dense<0.000000e+00> : vector<8x128xf32>
    %15 = tpu.matmul %12, %13, %cst_9 {dimension_numbers = #tpu.dot_dimension_numbers<[1], [0], [0], [1], [0, 0, 1, 1], [], []>} : vector<8x128xf32>, vector<128x128xf32>, vector<8x128xf32> -> vector<8x128xf32>
    %16 = vector.broadcast %14 : vector<1x128xf32> to vector<8x128xf32>
    %17 = arith.addf %15, %16 : vector<8x128xf32>
    %18 = tpu.iota {dimensions = array<i32: 1>} : vector<8x128xi32>
    %cst_10 = arith.constant dense<0.000000e+00> : vector<8xf32>
    %19 = vector.multi_reduction <add>, %17, %cst_10 [1] : vector<8x128xf32> to vector<8xf32>
    %20 = vector.shape_cast %19 : vector<8xf32> to vector<8x1xf32>
    %c4_i32 = arith.constant 4 : i32
    %21 = vector.broadcast %c4_i32 : i32 to vector<8x128xi32>
    %22 = arith.cmpi eq, %18, %21 : vector<8x128xi32>
    %cst_11 = arith.constant 0.000000e+00 : f32
    %23 = vector.broadcast %cst_11 : f32 to vector<8x128xf32>
    %24 = arith.select %22, %17, %23 : vector<8x128xi1>, vector<8x128xf32>
    %cst_12 = arith.constant dense<0.000000e+00> : vector<8xf32>
    %25 = vector.multi_reduction <add>, %24, %cst_12 [1] : vector<8x128xf32> to vector<8xf32>
    %26 = vector.shape_cast %25 : vector<8xf32> to vector<8x1xf32>
    %27 = arith.subf %20, %26 : vector<8x1xf32>
    %cst_13 = arith.constant 2.500000e-01 : f32
    %28 = vector.broadcast %cst_13 : f32 to vector<8x1xf32>
    %29 = arith.mulf %27, %28 : vector<8x1xf32>
    %30 = arith.subf %26, %29 : vector<8x1xf32>
    %31 = vector.broadcast %30 : vector<8x1xf32> to vector<8x128xf32>
    %32 = arith.addf %17, %31 : vector<8x128xf32>
    %c0_14 = arith.constant 0 : index
    %c0_15 = arith.constant 0 : index
    %33 = vector.load %arg3[%c0_14, %c0_15] : memref<8x128xf32, #tpu.memory_space<vmem>>, vector<8x128xf32>
    tpu.vector_store %arg3[%c0_14, %c0_15], %32 {strides = array<i32>} : memref<8x128xf32, #tpu.memory_space<vmem>>, vector<8x128xf32>,
    return
  }
  func.func @transform_0(%arg0: i32) -> (i32, i32) {
    %c0_i32 = arith.constant 0 : i32
    %c0_i32_0 = arith.constant 0 : i32
    return %arg0, %c0_i32 : i32, i32
  }
  func.func @transform_1(%arg0: i32) -> (i32, i32) {
    %c0_i32 = arith.constant 0 : i32
    %c0_i32_0 = arith.constant 0 : i32
    %c0_i32_1 = arith.constant 0 : i32
    return %c0_i32, %c0_i32_0 : i32, i32
  }
  func.func @transform_2(%arg0: i32) -> (i32, i32) {
    %c0_i32 = arith.constant 0 : i32
    %c0_i32_0 = arith.constant 0 : i32
    return %arg0, %c0_i32 : i32, i32
  }
}

</mosaic_0001>

<llo_original>
// kernel: fwd.1
$region0: #{fwd.1}
  #allocation0 [shape = 'u32[]', space=smem, size = 0x4, offset = 0x4, fixed_abs, tag = 'smem constant byte address 0x4 - core index']
  #allocation1 [shape = 'u32[144,128]{1,0:T(1,128)}', space=vmem, size = 0x12000, scoped, tag = 'internal scratch']
  %s0 = inlined_call_operand.hbm [shape: f32[8,16], index: 0, kind: input, shape index: {}]
  %s1 = inlined_call_operand.hbm [shape: f32[392,128], index: 1, kind: input, shape index: {}]
  %s2 = inlined_call_operand.vmem [shape: f32[8,128], index: 2, kind: output, shape index: {}]
  %s3 = sld [smem:[#allocation0]]
  $region26: #{fwd.1} parent=0
    _
  %s5 = ssub.s32 1, %s3
  %s6 = scalar_select 0, %s5, %s3
  $region1: #{fwd.1} parent=0
    #allocation2 [shape = 'u8[4096]{0}', space=vmem, size = 0x1000, scoped, tag = 'input window, operand 0, single buffered']
    #allocation3 [shape = 's32[1]{0}', space=sflag, size = 0x4, scoped, tag = 'scoped memory for fwd.1']
    #allocation4 [shape = 'u8[200704]{0}', space=vmem, size = 0x31000, scoped, tag = 'input window, operand 1, single buffered']
    #allocation5 [shape = 's32[1]{0}', space=sflag, size = 0x4, scoped, tag = 'scoped memory for fwd.1']
    %7 = vsyncpa [#allocation3], 0
    %8 = vsyncpa [#allocation5], 0
    // Predicated region
    $region2: #{fwd.1} parent=1 // pred_check
      _
    $region3: #{fwd.1} parent=1 // pred_check_branch
      %10 = sbr.rel (0) target = $region5
    $region4: #{fwd.1} parent=1 // pred_region
      %s12 = ssub.s32 128, 128
      %13 = vsyncadd [#allocation3], %s12
      %s15 = sshll.u32 [#allocation2], 4
      %s16 = int_to_ptr.vmem [resolvable:$true] %s15
      %18 = dma.hbm_to_vmem [thread:$0]  %s0, 128, %s16, [#allocation3]
    $region5: #{fwd.1} parent=1 // pred_fallthru
      _
    // Predicated region
    $region6: #{fwd.1} parent=1 // pred_check
      _
    $region7: #{fwd.1} parent=1 // pred_check_branch
      %20 = sbr.rel (0) target = $region9
    $region8: #{fwd.1} parent=1 // pred_region
      %s22 = ssub.s32 6272, 6272
      %23 = vsyncadd [#allocation5], %s22
      %s24 = sshll.u32 [#allocation4], 4
      %s25 = int_to_ptr.vmem [resolvable:$true] %s24
      %30 = dma.hbm_to_vmem [thread:$0]  %s1, 6272, %s25, [#allocation5], 128, 128, 8
    $region9: #{fwd.1} parent=1 // pred_fallthru
      _
    // Predicated region
    $region10: #{fwd.1} parent=1 // pred_check
      _
    $region11: #{fwd.1} parent=1 // pred_check_branch
      %32 = sbr.rel (0) target = $region13
    $region12: #{fwd.1} parent=1 // pred_region
      %33 = dma.done [#allocation3], 128
    $region13: #{fwd.1} parent=1 // pred_fallthru
      _
    // Predicated region
    $region14: #{fwd.1} parent=1 // pred_check
      _
    $region15: #{fwd.1} parent=1 // pred_check_branch
      %35 = sbr.rel (0) target = $region17
    $region16: #{fwd.1} parent=1 // pred_region
      %36 = dma.done [#allocation5], 6272
    $region17: #{fwd.1} parent=1 // pred_fallthru
      _
    %v37 = vld [vmem:[#allocation2] sm:$0xff]
    %v38 = vld [vmem:[#allocation4] sm:$0xff]
    %v39 = vld [vmem:[#allocation4 + $0x8] sm:$0xff]
    %v40 = vld [vmem:[#allocation4 + $0x180] sm:$0x1]
    %v41 = vlaneseq
    %v42 = vshrl.u32 %v41, 7
    %v43 = vsub.s32 0, %v42
    %v44 = vrot.slane %v40, %v43
    %vm45 = vcmask 130048
    %v47 = vsel %vm45, %v37, 0
    %49 = vmatprep.subr.mxu0 0.0
    %50 = vmatpush1.msra.mxu0 %v38
    %51 = vmatprep.subr.mxu0 0.0
    %52 = vmatpush1.msra.mxu0 %v39
    %53 = vmatprep.subr.mxu0 0.0
    %54 = vmatpush1.msra.mxu0 0.0
    %55 = vmatprep.subr.mxu0 0.0
    %56 = vmatpush1.msra.mxu0 0.0
    %57 = vmatprep.subr.mxu0 0.0
    %58 = vmatpush1.msra.mxu0 0.0
    %59 = vmatprep.subr.mxu0 0.0
    %60 = vmatpush1.msra.mxu0 0.0
    %61 = vmatprep.subr.mxu0 0.0
    %62 = vmatpush1.msra.mxu0 0.0
    %63 = vmatprep.subr.mxu0 0.0
    %64 = vmatpush1.msra.mxu0 0.0
    %65 = vmatprep.subr.mxu0 0.0
    %66 = vmatpush1.msra.mxu0 0.0
    %67 = vmatprep.subr.mxu0 0.0
    %68 = vmatpush1.msra.mxu0 0.0
    %69 = vmatprep.subr.mxu0 0.0
    %70 = vmatpush1.msra.mxu0 0.0
    %71 = vmatprep.subr.mxu0 0.0
    %72 = vmatpush1.msra.mxu0 0.0
    %73 = vmatprep.subr.mxu0 0.0
    %74 = vmatpush1.msra.mxu0 0.0
    %75 = vmatprep.subr.mxu0 0.0
    %76 = vmatpush1.msra.mxu0 0.0
    %77 = vmatprep.subr.mxu0 0.0
    %78 = vmatpush1.msra.mxu0 0.0
    %79 = vmatprep.subr.mxu0 0.0
    %80 = vmatpush1.msra.mxu0 0.0
    %81 = vmatprep.subr.mxu0 0.0
    %82 = vmatpush1.msra.mxu0 0.0
    %83 = vmatprep.subr.mxu0 0.0
    %84 = vmatpush1.msra.mxu0 0.0
    %85 = vmatprep.subr.mxu0 0.0
    %86 = vmatpush1.msra.mxu0 0.0
    %87 = vmatprep.subr.mxu0 0.0
    %88 = vmatpush1.msra.mxu0 0.0
    %89 = vmatprep.subr.mxu0 0.0
    %90 = vmatpush1.msra.mxu0 0.0
    %91 = vmatprep.subr.mxu0 0.0
    %92 = vmatpush1.msra.mxu0 0.0
    %93 = vmatprep.subr.mxu0 0.0
    %94 = vmatpush1.msra.mxu0 0.0
    %95 = vmatprep.subr.mxu0 0.0
    %96 = vmatpush1.msra.mxu0 0.0
    %97 = vmatprep.subr.mxu0 0.0
    %98 = vmatpush1.msra.mxu0 0.0
    %99 = vmatprep.subr.mxu0 0.0
    %100 = vmatpush1.msra.mxu0 0.0
    %101 = vmatprep.subr.mxu0 0.0
    %102 = vmatpush1.msra.mxu0 0.0
    %103 = vmatprep.subr.mxu0 0.0
    %104 = vmatpush1.msra.mxu0 0.0
    %105 = vmatprep.subr.mxu0 0.0
    %106 = vmatpush1.msra.mxu0 0.0
    %107 = vmatprep.subr.mxu0 0.0
    %108 = vmatpush1.msra.mxu0 0.0
    %109 = vmatprep.subr.mxu0 0.0
    %110 = vmatpush1.msra.mxu0 0.0
    %111 = vmatprep.subr.mxu0 0.0
    %112 = vmatpush1.msra.mxu0 0.0
    %113 = vmatprep.mubr.f32.mxu0 0.0
    %114 = vmatmul.mubr.f32.gmra.mrb[0].mxu0 %v47
    %v115 = vpop.f32.mrb[0].mxu0
    %v116 = vadd.f32 %v44, %v115
    %v117 = vpop.f32.mrb[0].mxu0
    %118 = vdwg.mxu0
    %v119 = vtanh.pop %v116
    %v120 = vld [vmem:[#allocation4 + $0x80] sm:$0xff]
    %v121 = vld [vmem:[#allocation4 + $0x88] sm:$0xff]
    %v122 = vld [vmem:[#allocation4 + $0x90] sm:$0xff]
    %v123 = vld [vmem:[#allocation4 + $0x98] sm:$0xff]
    %v124 = vld [vmem:[#allocation4 + $0xa0] sm:$0xff]
    %v125 = vld [vmem:[#allocation4 + $0xa8] sm:$0xff]
    %v126 = vld [vmem:[#allocation4 + $0xb0] sm:$0xff]
    %v127 = vld [vmem:[#allocation4 + $0xb8] sm:$0xff]
    %v128 = vld [vmem:[#allocation4 + $0xc0] sm:$0xff]
    %v129 = vld [vmem:[#allocation4 + $0xc8] sm:$0xff]
    %v130 = vld [vmem:[#allocation4 + $0xd0] sm:$0xff]
    %v131 = vld [vmem:[#allocation4 + $0xd8] sm:$0xff]
    %v132 = vld [vmem:[#allocation4 + $0xe0] sm:$0xff]
    %v133 = vld [vmem:[#allocation4 + $0xe8] sm:$0xff]
    %v134 = vld [vmem:[#allocation4 + $0xf0] sm:$0xff]
    %v135 = vld [vmem:[#allocation4 + $0xf8] sm:$0xff]
    %v136 = vld [vmem:[#allocation4 + $0x181] sm:$0x1]
    %v137 = vlaneseq
    %v138 = vshrl.u32 %v137, 7
    %v139 = vsub.s32 0, %v138
    %v140 = vrot.slane %v136, %v139
    %141 = vmatprep.subr.mxu0 0.0
    %142 = vmatpush1.msra.mxu0 %v120
    %143 = vmatprep.subr.mxu0 0.0
    %144 = vmatpush1.msra.mxu0 %v121
    %145 = vmatprep.subr.mxu0 0.0
    %146 = vmatpush1.msra.mxu0 %v122
    %147 = vmatprep.subr.mxu0 0.0
    %148 = vmatpush1.msra.mxu0 %v123
    %149 = vmatprep.subr.mxu0 0.0
    %150 = vmatpush1.msra.mxu0 %v124
    %151 = vmatprep.subr.mxu0 0.0
    %152 = vmatpush1.msra.mxu0 %v125
    %153 = vmatprep.subr.mxu0 0.0
    %154 = vmatpush1.msra.mxu0 %v126
    %155 = vmatprep.subr.mxu0 0.0
    %156 = vmatpush1.msra.mxu0 %v127
    %157 = vmatprep.subr.mxu0 0.0
    %158 = vmatpush1.msra.mxu0 %v128
    %159 = vmatprep.subr.mxu0 0.0
    %160 = vmatpush1.msra.mxu0 %v129
    %161 = vmatprep.subr.mxu0 0.0
    %162 = vmatpush1.msra.mxu0 %v130
    %163 = vmatprep.subr.mxu0 0.0
    %164 = vmatpush1.msra.mxu0 %v131
    %165 = vmatprep.subr.mxu0 0.0
    %166 = vmatpush1.msra.mxu0 %v132
    %167 = vmatprep.subr.mxu0 0.0
    %168 = vmatpush1.msra.mxu0 %v133
    %169 = vmatprep.subr.mxu0 0.0
    %170 = vmatpush1.msra.mxu0 %v134
    %171 = vmatprep.subr.mxu0 0.0
    %172 = vmatpush1.msra.mxu0 %v135
    %173 = vmatprep.subr.mxu0 0.0
    %174 = vmatpush1.msra.mxu0 0.0
    %175 = vmatprep.subr.mxu0 0.0
    %176 = vmatpush1.msra.mxu0 0.0
    %177 = vmatprep.subr.mxu0 0.0
    %178 = vmatpush1.msra.mxu0 0.0
    %179 = vmatprep.subr.mxu0 0.0
    %180 = vmatpush1.msra.mxu0 0.0
    %181 = vmatprep.subr.mxu0 0.0
    %182 = vmatpush1.msra.mxu0 0.0
    %183 = vmatprep.subr.mxu0 0.0
    %184 = vmatpush1.msra.mxu0 0.0
    %185 = vmatprep.subr.mxu0 0.0
    %186 = vmatpush1.msra.mxu0 0.0
    %187 = vmatprep.subr.mxu0 0.0
    %188 = vmatpush1.msra.mxu0 0.0
    %189 = vmatprep.subr.mxu0 0.0
    %190 = vmatpush1.msra.mxu0 0.0
    %191 = vmatprep.subr.mxu0 0.0
    %192 = vmatpush1.msra.mxu0 0.0
    %193 = vmatprep.subr.mxu0 0.0
    %194 = vmatpush1.msra.mxu0 0.0
    %195 = vmatprep.subr.mxu0 0.0
    %196 = vmatpush1.msra.mxu0 0.0
    %197 = vmatprep.subr.mxu0 0.0
    %198 = vmatpush1.msra.mxu0 0.0
    %199 = vmatprep.subr.mxu0 0.0
    %200 = vmatpush1.msra.mxu0 0.0
    %201 = vmatprep.subr.mxu0 0.0
    %202 = vmatpush1.msra.mxu0 0.0
    %203 = vmatprep.subr.mxu0 0.0
    %204 = vmatpush1.msra.mxu0 0.0
    %205 = vmatprep.mubr.f32.mxu0 0.0
    %206 = vmatmul.mubr.f32.gmra.mrb[0].mxu0 %v119
    %v207 = vpop.f32.mrb[0].mxu0
    %v208 = vadd.f32 %v140, %v207
    %v209 = vpop.f32.mrb[0].mxu0
    %210 = vdwg.mxu0
    %v211 = vtanh.pop %v208
    %v212 = vld [vmem:[#allocation4 + $0x100] sm:$0xff]
    %v213 = vld [vmem:[#allocation4 + $0x108] sm:$0xff]
    %v214 = vld [vmem:[#allocation4 + $0x110] sm:$0xff]
    %v215 = vld [vmem:[#allocation4 + $0x118] sm:$0xff]
    %v216 = vld [vmem:[#allocation4 + $0x120] sm:$0xff]
    %v217 = vld [vmem:[#allocation4 + $0x128] sm:$0xff]
    %v218 = vld [vmem:[#allocation4 + $0x130] sm:$0xff]
    %v219 = vld [vmem:[#allocation4 + $0x138] sm:$0xff]
    %v220 = vld [vmem:[#allocation4 + $0x140] sm:$0xff]
    %v221 = vld [vmem:[#allocation4 + $0x148] sm:$0xff]
    %v222 = vld [vmem:[#allocation4 + $0x150] sm:$0xff]
    %v223 = vld [vmem:[#allocation4 + $0x158] sm:$0xff]
    %v224 = vld [vmem:[#allocation4 + $0x160] sm:$0xff]
    %v225 = vld [vmem:[#allocation4 + $0x168] sm:$0xff]
    %v226 = vld [vmem:[#allocation4 + $0x170] sm:$0xff]
    %v227 = vld [vmem:[#allocation4 + $0x178] sm:$0xff]
    %v228 = vld [vmem:[#allocation4 + $0x182] sm:$0x1]
    %v229 = vlaneseq
    %v230 = vshrl.u32 %v229, 7
    %v231 = vsub.s32 0, %v230
    %v232 = vrot.slane %v228, %v231
    %233 = vmatprep.subr.mxu0 0.0
    %234 = vmatpush1.msra.mxu0 %v212
    %235 = vmatprep.subr.mxu0 0.0
    %236 = vmatpush1.msra.mxu0 %v213
    %237 = vmatprep.subr.mxu0 0.0
    %238 = vmatpush1.msra.mxu0 %v214
    %239 = vmatprep.subr.mxu0 0.0
    %240 = vmatpush1.msra.mxu0 %v215
    %241 = vmatprep.subr.mxu0 0.0
    %242 = vmatpush1.msra.mxu0 %v216
    %243 = vmatprep.subr.mxu0 0.0
    %244 = vmatpush1.msra.mxu0 %v217
    %245 = vmatprep.subr.mxu0 0.0
    %246 = vmatpush1.msra.mxu0 %v218
    %247 = vmatprep.subr.mxu0 0.0
    %248 = vmatpush1.msra.mxu0 %v219
    %249 = vmatprep.subr.mxu0 0.0
    %250 = vmatpush1.msra.mxu0 %v220
    %251 = vmatprep.subr.mxu0 0.0
    %252 = vmatpush1.msra.mxu0 %v221
    %253 = vmatprep.subr.mxu0 0.0
    %254 = vmatpush1.msra.mxu0 %v222
    %255 = vmatprep.subr.mxu0 0.0
    %256 = vmatpush1.msra.mxu0 %v223
    %257 = vmatprep.subr.mxu0 0.0
    %258 = vmatpush1.msra.mxu0 %v224
    %259 = vmatprep.subr.mxu0 0.0
    %260 = vmatpush1.msra.mxu0 %v225
    %261 = vmatprep.subr.mxu0 0.0
    %262 = vmatpush1.msra.mxu0 %v226
    %263 = vmatprep.subr.mxu0 0.0
    %264 = vmatpush1.msra.mxu0 %v227
    %265 = vmatprep.subr.mxu0 0.0
    %266 = vmatpush1.msra.mxu0 0.0
    %267 = vmatprep.subr.mxu0 0.0
    %268 = vmatpush1.msra.mxu0 0.0
    %269 = vmatprep.subr.mxu0 0.0
    %270 = vmatpush1.msra.mxu0 0.0
    %271 = vmatprep.subr.mxu0 0.0
    %272 = vmatpush1.msra.mxu0 0.0
    %273 = vmatprep.subr.mxu0 0.0
    %274 = vmatpush1.msra.mxu0 0.0
    %275 = vmatprep.subr.mxu0 0.0
    %276 = vmatpush1.msra.mxu0 0.0
    %277 = vmatprep.subr.mxu0 0.0
    %278 = vmatpush1.msra.mxu0 0.0
    %279 = vmatprep.subr.mxu0 0.0
    %280 = vmatpush1.msra.mxu0 0.0
    %281 = vmatprep.subr.mxu0 0.0
    %282 = vmatpush1.msra.mxu0 0.0
    %283 = vmatprep.subr.mxu0 0.0
    %284 = vmatpush1.msra.mxu0 0.0
    %285 = vmatprep.subr.mxu0 0.0
    %286 = vmatpush1.msra.mxu0 0.0
    %287 = vmatprep.subr.mxu0 0.0
    %288 = vmatpush1.msra.mxu0 0.0
    %289 = vmatprep.subr.mxu0 0.0
    %290 = vmatpush1.msra.mxu0 0.0
    %291 = vmatprep.subr.mxu0 0.0
    %292 = vmatpush1.msra.mxu0 0.0
    %293 = vmatprep.subr.mxu0 0.0
    %294 = vmatpush1.msra.mxu0 0.0
    %295 = vmatprep.subr.mxu0 0.0
    %296 = vmatpush1.msra.mxu0 0.0
    %297 = vmatprep.mubr.f32.mxu0 0.0
    %298 = vmatmul.mubr.f32.gmra.mrb[0].mxu0 %v211
    %v299 = vpop.f32.mrb[0].mxu0
    %v300 = vadd.f32 %v232, %v299
    %v301 = vpop.f32.mrb[0].mxu0
    %302 = vdwg.mxu0
    %v303 = vlaneseq
    %v304 = vand.u32 %v303, 127
    %305 = vadd.xlane.f32.xlu0 %v300
    %v306 = vpop.xlane.xlu0 %305
    %vm307 = vcmp.eq.s32.totalorder %v304, 4
    %v308 = vsel %vm307, %v300, 0.0
    %309 = vadd.xlane.f32.xlu0 %v308
    %v310 = vpop.xlane.xlu0 %309
    %v311 = vsub.f32 %v306, %v310
    %v312 = vmul.f32 %v311, 0.25
    %v313 = vsub.f32 %v310, %v312
    %v314 = vadd.f32 %v300, %v313
    %315 = vst [vmem:[%s2] sm:$0xff] %v314
    // Predicated region
    $region18: #{fwd.1} parent=1 // pred_check
      _
    $region19: #{fwd.1} parent=1 // pred_check_branch
      %317 = sbr.rel (0) target = $region21
    $region20: #{fwd.1} parent=1 // pred_region
      _
    $region21: #{fwd.1} parent=1 // pred_fallthru
      _
    // Predicated region
    $region22: #{fwd.1} parent=1 // pred_check
      _
    $region23: #{fwd.1} parent=1 // pred_check_branch
      %319 = sbr.rel (0) target = $region25
    $region24: #{fwd.1} parent=1 // pred_region
      _
    $region25: #{fwd.1} parent=1 // pred_fallthru
      _
    %320 = vsyncpa [#allocation3], 1
    %321 = vsyncpa [#allocation5], 1

</llo_original>
